<compile_context>
chip_gen: v5e
topology: v5e:2x2
jax: 0.10.0
libtpu: 0.0.40
codegen_flags: <defaults>
</compile_context>

<pallas_src>
import jax
import jax.numpy as jnp
from jax.experimental import pallas as pl
from jax.experimental.pallas import tpu as pltpu


def _round_up(a, b):
    return ((a + b - 1) // b) * b


def _hw_params():
    """Pick (tm, th, vmem_limit_bytes, n_parallel_cores) for the local TPU generation."""
    vmem_phys = None
    try:
        info = pltpu.get_tpu_info()
        v = getattr(info, "vmem_capacity_bytes", None)
        if v is not None and int(v) > 0:
            vmem_phys = int(v)
    except Exception:
        vmem_phys = None
    if vmem_phys is None:
        # Unknown hardware: conservative config that fits every generation.
        return 256, 512, 48 * 1024 * 1024, 2
    if vmem_phys <= 64 * 1024 * 1024:
        # v7x-like: 64 MiB per TensorCore, 2 TCs, very fast HBM -> smaller row tiles
        # and ~15% VMEM headroom for Mosaic internal scratch.
        return 256, 512, int(vmem_phys * 0.85), 2
    # v5e / v6e: 128 MiB VMEM, 1 TensorCore -> big row tiles to amortize the per-row-tile
    # weight re-stream against the (slower) HBM.
    return 1024, 512, min(int(vmem_phys * 0.85), 112 * 1024 * 1024), 1


def _ffn_kernel(x_ref, w1_ref, b1_ref, w2_ref, b2_ref, o_ref, *acc_scratch):
    # grid = (cdiv(M_pad, tm), H_pad // th); axis 1 is the hidden-dim reduction.
    #   x_ref : (tm, D_pad)    w1_ref: (D_pad, th)   b1_ref: (1, th)
    #   w2_ref: (th, D_pad)    b2_ref: (1, D_pad)    o_ref : (tm, D_pad)
    # acc_scratch is empty when o_ref is f32 (accumulate straight into the resident
    # output block); otherwise it holds one (tm, D_pad) f32 buffer.
    acc_ref = acc_scratch[0] if acc_scratch else o_ref
    k = pl.program_id(1)

    # linear1 chunk on the MXU (f32 accumulation); bias + ReLU on the VPU in f32.
    # Dropout(p=0.1) in eval mode == identity.
    h = jnp.dot(x_ref[...], w1_ref[...], preferred_element_type=jnp.float32)
    h = jnp.maximum(h + b1_ref[...], 0.0)

    # linear2 partial product over this hidden chunk, accumulated in f32.
    partial = jnp.dot(h.astype(w2_ref.dtype), w2_ref[...],
                      preferred_element_type=jnp.float32)

    @pl.when(k == 0)
    def _():
        # First chunk: straight assign (no zero-fill + read-modify-write) and fold in b2.
        acc_ref[...] = (partial + b2_ref[...]).astype(acc_ref.dtype)

    @pl.when(k > 0)
    def _():
        acc_ref[...] += partial.astype(acc_ref.dtype)

    if acc_scratch:
        @pl.when(k == pl.num_programs(1) - 1)
        def _():
            o_ref[...] = acc_ref[...].astype(o_ref.dtype)


def feed_forward(x, w1, b1, w2, b2, *, compute_dtype=jnp.bfloat16,
                 tm=None, th=None, vmem_limit_bytes=None):
    """FeedForward: linear2(relu(dropout_eval(linear1(x)))).

    x : (..., D_in)
    w1: (D_in, H)   (transposed vs. PyTorch nn.Linear weight)
    b1: (H,)
    w2: (H, D_in)
    b2: (D_in,)

    Matmul operands are cast to `compute_dtype` (default bf16) with f32 accumulation;
    output keeps x.dtype.  Expect mixed-precision-level differences vs. a pure-f32
    reference when compute_dtype != float32.
    """
    orig_shape = x.shape
    out_dtype = x.dtype
    D_in = orig_shape[-1]
    H = w1.shape[1]
    x2 = x.reshape(-1, D_in)
    M = x2.shape[0]

    tm_hw, th_hw, vmem_hw, n_cores = _hw_params()
    user_tm = tm is not None
    tm = tm if user_tm else tm_hw
    th = th if th is not None else th_hw
    vmem_limit_bytes = int(vmem_limit_bytes if vmem_limit_bytes is not None else vmem_hw)

    # Lane-dense (multiple-of-128) feature dims; sublane-aligned (x8) rows.
    D_pad = _round_up(D_in, 128)
    M_pad = _round_up(M, 8)                       # only to a sublane multiple, NOT to tm
    tm = _round_up(max(8, min(tm, M_pad)), 8)
    if (not user_tm) and n_cores > 1 and M_pad > 8:
        # Keep >=2 row tiles so both TensorCores get work on the "parallel" axis.
        tm = min(tm, _round_up((M_pad + n_cores - 1) // n_cores, 8))
    th = _round_up(max(128, min(th, _round_up(H, 128))), 128)
    H_pad = _round_up(H, th)

    grid_i = pl.cdiv(M_pad, tm)                   # ragged last row tile allowed
    grid = (grid_i, H_pad // th)

    # Zero-padding is exact: zero x/W columns/rows and zero b1 entries contribute
    # nothing through matmul / bias-add / ReLU; padded output cols/rows are sliced off.
    def _pad(a, pads):
        return jnp.pad(a, pads) if any(p[1] for p in pads) else a

    xp = _pad(x2, ((0, M_pad - M), (0, D_pad - D_in))).astype(compute_dtype)
    w1p = _pad(w1, ((0, D_pad - D_in), (0, H_pad - H))).astype(compute_dtype)
    w2p = _pad(w2, ((0, H_pad - H), (0, D_pad - D_in))).astype(compute_dtype)
    b1p = _pad(b1.reshape(1, H), ((0, 0), (0, H_pad - H))).astype(jnp.float32)
    b2p = _pad(b2.reshape(1, D_in), ((0, 0), (0, D_pad - D_in))).astype(jnp.float32)

    # f32 outputs accumulate directly into the resident output block (no scratch).
    needs_acc = jnp.dtype(out_dtype) != jnp.dtype(jnp.float32)
    scratch = [pltpu.VMEM((tm, D_pad), jnp.float32)] if needs_acc else []

    c_item = jnp.dtype(compute_dtype).itemsize
    o_item = jnp.dtype(out_dtype).itemsize
    cost = pl.CostEstimate(
        flops=4 * M_pad * D_pad * H_pad,          # two matmuls
        transcendentals=0,
        bytes_accessed=int(
            M_pad * D_pad * c_item                          # x read once
            + grid_i * 2 * D_pad * H_pad * c_item           # W1 + W2 streamed per row tile
            + grid_i * (H_pad + D_pad) * 4                  # biases (f32) per row tile
            + M_pad * D_pad * o_item                        # output written once
        ),
    )

    # TODO(synk): on v5e, if profiling shows exposed weight DMA on the k axis, add
    # pipeline_mode=pl.Buffered(3) to the W1/W2 BlockSpecs (VMEM budget permitting).
    out = pl.pallas_call(
        _ffn_kernel,
        out_shape=jax.ShapeDtypeStruct((M_pad, D_pad), out_dtype),
        grid_spec=pltpu.PrefetchScalarGridSpec(
            num_scalar_prefetch=0,
            grid=grid,
            in_specs=[
                pl.BlockSpec((tm, D_pad), lambda i, k: (i, 0)),   # x row tile
                pl.BlockSpec((D_pad, th), lambda i, k: (0, k)),   # W1 column chunk
                pl.BlockSpec((1, th),     lambda i, k: (0, k)),   # b1 chunk
                pl.BlockSpec((th, D_pad), lambda i, k: (k, 0)),   # W2 row chunk
                pl.BlockSpec((1, D_pad),  lambda i, k: (0, 0)),   # b2 (resident)
            ],
            out_specs=pl.BlockSpec((tm, D_pad), lambda i, k: (i, 0)),
            scratch_shapes=scratch,
        ),
        compiler_params=pltpu.CompilerParams(
            dimension_semantics=("parallel", "arbitrary"),
            vmem_limit_bytes=vmem_limit_bytes,
        ),
        cost_estimate=cost,
    )(xp, w1p, b1p, w2p, b2p)

    if M_pad != M or D_pad != D_in:
        out = out[:M, :D_in]
    return out.reshape(orig_shape)


if __name__ == "__main__":
    # Small shapes consistent with the module: batch=2, seq=8, input_dim=32, hidden_dim=64.
    B, S, D_in, H = 2, 8, 32, 64

    key = jax.random.PRNGKey(0)
    kx, k1, k2, k3, k4 = jax.random.split(key, 5)

    x = jax.random.normal(kx, (B, S, D_in), dtype=jnp.float32)

    # PyTorch nn.Linear init bounds; weights stored transposed as (in, out).
    bound1 = 1.0 / (D_in ** 0.5)
    w1 = jax.random.uniform(k1, (D_in, H), minval=-bound1, maxval=bound1, dtype=jnp.float32)
    b1 = jax.random.uniform(k2, (H,), minval=-bound1, maxval=bound1, dtype=jnp.float32)
    bound2 = 1.0 / (H ** 0.5)
    w2 = jax.random.uniform(k3, (H, D_in), minval=-bound2, maxval=bound2, dtype=jnp.float32)
    b2 = jax.random.uniform(k4, (D_in,), minval=-bound2, maxval=bound2, dtype=jnp.float32)

    def ref_ffn(xx):
        xf = xx.reshape(-1, D_in).astype(jnp.float32)
        return (jnp.maximum(xf @ w1 + b1, 0.0) @ w2 + b2).reshape(xx.shape)

    # 1) Default path: bf16 MXU operands, f32 accumulation, f32 output (no scratch).
    out_default = feed_forward(x, w1, b1, w2, b2)
    jax.block_until_ready(out_default)
    ref = ref_ffn(x)
    assert out_default.shape == ref.shape
    assert jnp.allclose(out_default, ref, atol=2e-2, rtol=2e-2), "bf16-compute path mismatch"

    # 2) Pure-f32 compute path with a ragged last row tile (M=24, tm=16) — tight check.
    x3 = jax.random.normal(kx, (3, 8, D_in), dtype=jnp.float32)
    out_f32 = feed_forward(x3, w1, b1, w2, b2, compute_dtype=jnp.float32, tm=16)
    jax.block_until_ready(out_f32)
    assert jnp.allclose(out_f32, ref_ffn(x3), atol=1e-5, rtol=1e-5), "f32 path mismatch"

    # 3) bf16 output path (exercises the f32 scratch accumulator + cast epilogue).
    out_bf16 = feed_forward(x.astype(jnp.bfloat16), w1, b1, w2, b2)
    jax.block_until_ready(out_bf16)
    assert out_bf16.dtype == jnp.bfloat16
    assert jnp.allclose(out_bf16.astype(jnp.float32), ref, atol=3e-2, rtol=3e-2), \
        "bf16-output path mismatch"

    print("KERNEL_OK")
</pallas_src>

<mosaic_0001>
module attributes {stable_mosaic.version = 11 : i64} {
  func.func @_ffn_kernel(%arg0: i32, %arg1: i32, %arg2: memref<8x128xbf16, #tpu.memory_space<vmem>>, %arg3: memref<128x128xbf16, #tpu.memory_space<vmem>>, %arg4: memref<1x128xf32, #tpu.memory_space<vmem>>, %arg5: memref<128x128xbf16, #tpu.memory_space<vmem>>, %arg6: memref<1x128xf32, #tpu.memory_space<vmem>>, %arg7: memref<8x128xf32, #tpu.memory_space<vmem>>) attributes {dimension_semantics = [#tpu.dimension_semantics<parallel>, #tpu.dimension_semantics<arbitrary>], iteration_bounds = array<i64: 2, 1>, scalar_prefetch = 0 : i64, scratch_operands = 0 : i64, tpu.core_type = #tpu.core_type<tc>, window_params = [{transform_indices = @transform_0, window_bounds = array<i64: 8, 128>}, {transform_indices = @transform_1, window_bounds = array<i64: 128, 128>}, {transform_indices = @transform_2, window_bounds = array<i64: 1, 128>}, {transform_indices = @transform_3, window_bounds = array<i64: 128, 128>}, {pipeline_mode = #tpu.pipeline_mode<synchronous>, transform_indices = @transform_4, window_bounds = array<i64: 1, 128>}, {transform_indices = @transform_5, window_bounds = array<i64: 8, 128>}]} {
    %c0 = arith.constant 0 : index
    %c0_0 = arith.constant 0 : index
    %0 = vector.load %arg2[%c0, %c0_0] : memref<8x128xbf16, #tpu.memory_space<vmem>>, vector<8x128xbf16>
    %c0_1 = arith.constant 0 : index
    %c0_2 = arith.constant 0 : index
    %1 = vector.load %arg3[%c0_1, %c0_2] : memref<128x128xbf16, #tpu.memory_space<vmem>>, vector<128x128xbf16>
    %cst = arith.constant dense<0.000000e+00> : vector<8x128xf32>
    %2 = tpu.matmul %0, %1, %cst {dimension_numbers = #tpu.dot_dimension_numbers<[1], [0], [0], [1], [0, 0, 1, 1], [], []>} : vector<8x128xbf16>, vector<128x128xbf16>, vector<8x128xf32> -> vector<8x128xf32>
    %c0_3 = arith.constant 0 : index
    %c0_4 = arith.constant 0 : index
    %3 = vector.load %arg4[%c0_3, %c0_4] : memref<1x128xf32, #tpu.memory_space<vmem>>, vector<1x128xf32>
    %4 = vector.broadcast %3 : vector<1x128xf32> to vector<8x128xf32>
    %5 = arith.addf %2, %4 : vector<8x128xf32>
    %cst_5 = arith.constant 0.000000e+00 : f32
    %6 = vector.broadcast %cst_5 : f32 to vector<8x128xf32>
    %7 = arith.maximumf %5, %6 : vector<8x128xf32>
    %8 = arith.truncf %7 : vector<8x128xf32> to vector<8x128xbf16>
    %c0_6 = arith.constant 0 : index
    %c0_7 = arith.constant 0 : index
    %9 = vector.load %arg5[%c0_6, %c0_7] : memref<128x128xbf16, #tpu.memory_space<vmem>>, vector<128x128xbf16>
    %cst_8 = arith.constant dense<0.000000e+00> : vector<8x128xf32>
    %10 = tpu.matmul %8, %9, %cst_8 {dimension_numbers = #tpu.dot_dimension_numbers<[1], [0], [0], [1], [0, 0, 1, 1], [], []>} : vector<8x128xbf16>, vector<128x128xbf16>, vector<8x128xf32> -> vector<8x128xf32>
    %c0_i32 = arith.constant 0 : i32
    %11 = arith.cmpi eq, %arg1, %c0_i32 : i32
    %12 = arith.extui %11 : i1 to i32
    %c0_i32_9 = arith.constant 0 : i32
    %13 = arith.cmpi ne, %12, %c0_i32_9 : i32
    scf.if %13 {
      %c0_12 = arith.constant 0 : index
      %c0_13 = arith.constant 0 : index
      %17 = vector.load %arg6[%c0_12, %c0_13] : memref<1x128xf32, #tpu.memory_space<vmem>>, vector<1x128xf32>
      %18 = vector.broadcast %17 : vector<1x128xf32> to vector<8x128xf32>
      %19 = arith.addf %10, %18 : vector<8x128xf32>
      %c0_14 = arith.constant 0 : index
      %c0_15 = arith.constant 0 : index
      %20 = vector.load %arg7[%c0_14, %c0_15] : memref<8x128xf32, #tpu.memory_space<vmem>>, vector<8x128xf32>
      tpu.vector_store %arg7[%c0_14, %c0_15], %19 {strides = array<i32>} : memref<8x128xf32, #tpu.memory_space<vmem>>, vector<8x128xf32>,
    } else {
    }
    %c0_i32_10 = arith.constant 0 : i32
    %14 = arith.cmpi sgt, %arg1, %c0_i32_10 : i32
    %15 = arith.extui %14 : i1 to i32
    %c0_i32_11 = arith.constant 0 : i32
    %16 = arith.cmpi ne, %15, %c0_i32_11 : i32
    scf.if %16 {
      %c0_12 = arith.constant 0 : index
      %c0_13 = arith.constant 0 : index
      %17 = vector.load %arg7[%c0_12, %c0_13] : memref<8x128xf32, #tpu.memory_space<vmem>>, vector<8x128xf32>
      %18 = arith.addf %17, %10 : vector<8x128xf32>
      %c0_14 = arith.constant 0 : index
      %c0_15 = arith.constant 0 : index
      %19 = vector.load %arg7[%c0_14, %c0_15] : memref<8x128xf32, #tpu.memory_space<vmem>>, vector<8x128xf32>
      tpu.vector_store %arg7[%c0_14, %c0_15], %18 {strides = array<i32>} : memref<8x128xf32, #tpu.memory_space<vmem>>, vector<8x128xf32>,
    } else {
    }
    return
  }
  func.func @transform_0(%arg0: i32, %arg1: i32) -> (i32, i32) {
    %c0_i32 = arith.constant 0 : i32
    %c0_i32_0 = arith.constant 0 : i32
    return %arg0, %c0_i32 : i32, i32
  }
  func.func @transform_1(%arg0: i32, %arg1: i32) -> (i32, i32) {
    %c0_i32 = arith.constant 0 : i32
    %c0_i32_0 = arith.constant 0 : i32
    return %c0_i32, %arg1 : i32, i32
  }
  func.func @transform_2(%arg0: i32, %arg1: i32) -> (i32, i32) {
    %c0_i32 = arith.constant 0 : i32
    %c0_i32_0 = arith.constant 0 : i32
    return %c0_i32, %arg1 : i32, i32
  }
  func.func @transform_3(%arg0: i32, %arg1: i32) -> (i32, i32) {
    %c0_i32 = arith.constant 0 : i32
    %c0_i32_0 = arith.constant 0 : i32
    return %arg1, %c0_i32 : i32, i32
  }
  func.func @transform_4(%arg0: i32, %arg1: i32) -> (i32, i32) {
    %c0_i32 = arith.constant 0 : i32
    %c0_i32_0 = arith.constant 0 : i32
    %c0_i32_1 = arith.constant 0 : i32
    return %c0_i32, %c0_i32_0 : i32, i32
  }
  func.func @transform_5(%arg0: i32, %arg1: i32) -> (i32, i32) {
    %c0_i32 = arith.constant 0 : i32
    %c0_i32_0 = arith.constant 0 : i32
    return %arg0, %c0_i32 : i32, i32
  }
}

</mosaic_0001>

<llo_original>
// kernel: tpu_custom_call.1
$region0: #{tpu_custom_call.1}
  #allocation0 [shape = 'u32[]', space=smem, size = 0x4, offset = 0x4, fixed_abs, tag = 'smem constant byte address 0x4 - core index']
  #allocation1 [shape = 'u32[72,128]{1,0:T(1,128)}', space=vmem, size = 0x9000, scoped, tag = 'internal scratch']
  %s0 = inlined_call_operand.hbm [shape: bf16[16,128], index: 0, kind: input, shape index: {}]
  %s1 = inlined_call_operand.hbm [shape: bf16[128,128], index: 1, kind: input, shape index: {}]
  %s2 = inlined_call_operand.vmem [shape: f32[1,128], index: 2, kind: input, shape index: {}]
  %s3 = inlined_call_operand.hbm [shape: bf16[128,128], index: 3, kind: input, shape index: {}]
  %s4 = inlined_call_operand.vmem [shape: f32[1,128], index: 4, kind: input, shape index: {}]
  %s5 = inlined_call_operand.hbm [shape: f32[16,128], index: 5, kind: output, shape index: {}]
  %s6 = sld [smem:[#allocation0]]
  $region73: #{tpu_custom_call.1} parent=0
    _
  %s8 = ssub.s32 1, %s6
  %s9 = scalar_select 0, %s8, %s6
  $region1: #{tpu_custom_call.1} parent=0
    #allocation2 [shape = 'u8[4096]{0}', space=vmem, size = 0x1000, scoped, tag = 'input window, operand 0']
    #allocation3 [shape = 's32[2]{0}', space=sflag, size = 0x8, scoped, tag = 'scoped memory for tpu_custom_call.1']
    #allocation4 [shape = 's32[2]{0}', space=sflag, size = 0x8, scoped, tag = 'scoped memory for tpu_custom_call.1']
    #allocation5 [shape = 'u8[32768]{0}', space=vmem, size = 0x8000, scoped, tag = 'input window, operand 1, single buffered']
    #allocation6 [shape = 's32[1]{0}', space=sflag, size = 0x4, scoped, tag = 'scoped memory for tpu_custom_call.1']
    #allocation7 [shape = 'u8[32768]{0}', space=vmem, size = 0x8000, scoped, tag = 'input window, operand 3, single buffered']
    #allocation8 [shape = 'u8[8192]{0}', space=vmem, size = 0x2000, scoped, tag = 'output window, operand 0']
    %10 = vsyncpa [#allocation3], 0
    %s11 = scalar_lea.sflag [#allocation3], 1
    %12 = vsyncpa %s11, 0
    %13 = vsyncpa [#allocation6], 0
    %14 = vsyncpa [#allocation4], 0
    %s15 = scalar_lea.sflag [#allocation4], 1
    %16 = vsyncpa %s15, 0
    loop: start=0, step=1, limit=4
    $region2: #{tpu_custom_call.1} parent=1 // loop_pre_header
      _
    $region3: #{tpu_custom_call.1} parent=1 // loop_header
      %s18 = sphi 0, %s22
      %p19 = scmp.ge.s32.totalorder %s18, 4
      %s25 = sphi 0, %s37
      %s26 = sphi 0, %s33
      %s27 = sphi 0, %s25
      %s28 = sphi 0, %s26
      %s29 = sphi 0, %s27
      %s30 = sphi 0, %s28
      %s40 = sphi 0, %s42
      %s43 = sphi 0, %s40
      %s44 = sphi 0, %s43
      %s60 = sphi 0, %s44
      %s66 = sphi 0, %s68
      %s69 = sphi 0, %s66
      %s70 = sphi 0, %s69
      %s86 = sphi 0, %s70
      %s92 = sphi 0, %s94
      %s95 = sphi 0, %s92
      %s96 = sphi 0, %s95
      %s112 = sphi 0, %s96
      %s118 = sphi 0, %s120
      %s121 = sphi 0, %s118
      %s122 = sphi 0, %s121
      %s138 = sphi 0, %s122
      %s142 = sphi 0, %s142
      %s144 = sphi 0, %s142
      %s145 = sphi 0, %s144
      %s159 = sphi 0, %s145
      %s165 = sphi 0, %s167
      %s168 = sphi 0, %s165
      %s169 = sphi 0, %s168
      %s185 = sphi 0, %s169
    $region4: #{tpu_custom_call.1} parent=1 // loop_header_branch
      %21 = sbr.rel (%p19) target = $region8
    $region5: #{tpu_custom_call.1} parent=1 // loop_body
      %s23 = ssub.s32 %s18, 1
      %s24 = ssub.s32 %s18, 2
      %s31 = sadd.s32 1, %s26
      %p32 = scmp.ge.s32.totalorder %s31, 1
      %s33 = scalar_select %p32, 0, %s31
      %s34 = sadd.s32 1, %s25
      %s35 = scalar_select %p32, %s34, %s25
      %p36 = scmp.ge.s32.totalorder %s35, 2
      %s37 = scalar_select %p36, 0, %s35
      %s38 = ssub.s32 %s25, %s37
      %p39 = scmp.eq.s32.totalorder %s38, 0
      %s41 = sadd.s32 %s40, 1
      %s42 = scalar_select %p39, %s40, %s41
      %p45 = pneg %p39
      %p46 = scmp.eq.s32.totalorder %s18, 1
      %p47 = por %p45, %p46
      %p48 = scmp.ne.s32.totalorder %s40, %s43
      %p49 = scmp.eq.s32.totalorder %s18, 0
      %p50 = por %p48, %p49
      %p51 = scmp.ne.s32.totalorder %s40, %s43
      %p52 = scmp.eq.s32.totalorder %s23, 1
      %p53 = por %p51, %p52
      %p54 = scmp.ne.s32.totalorder %s43, %s44
      %p55 = scmp.eq.s32.totalorder %s23, 0
      %p56 = por %p54, %p55
      %p57 = scmp.ne.s32.totalorder %s43, %s44
      %p58 = scmp.eq.s32.totalorder %s24, 1
      %p59 = por %p57, %p58
      %p61 = scmp.ne.s32.totalorder %s44, %s60
      %p62 = scmp.eq.s32.totalorder %s24, 0
      %p63 = por %p61, %p62
      %s64 = ssub.s32 %s26, %s33
      %p65 = scmp.eq.s32.totalorder %s64, 0
      %s67 = sadd.s32 %s66, 1
      %s68 = scalar_select %p65, %s66, %s67
      %p71 = pneg %p65
      %p72 = scmp.eq.s32.totalorder %s18, 1
      %p73 = por %p71, %p72
      %p74 = scmp.ne.s32.totalorder %s66, %s69
      %p75 = scmp.eq.s32.totalorder %s18, 0
      %p76 = por %p74, %p75
      %p77 = scmp.ne.s32.totalorder %s66, %s69
      %p78 = scmp.eq.s32.totalorder %s23, 1
      %p79 = por %p77, %p78
      %p80 = scmp.ne.s32.totalorder %s69, %s70
      %p81 = scmp.eq.s32.totalorder %s23, 0
      %p82 = por %p80, %p81
      %p83 = scmp.ne.s32.totalorder %s69, %s70
      %p84 = scmp.eq.s32.totalorder %s24, 1
      %p85 = por %p83, %p84
      %p87 = scmp.ne.s32.totalorder %s70, %s86
      %p88 = scmp.eq.s32.totalorder %s24, 0
      %p89 = por %p87, %p88
      %s90 = ssub.s32 %s26, %s33
      %p91 = scmp.eq.s32.totalorder %s90, 0
      %s93 = sadd.s32 %s92, 1
      %s94 = scalar_select %p91, %s92, %s93
      %p97 = pneg %p91
      %p98 = scmp.eq.s32.totalorder %s18, 1
      %p99 = por %p97, %p98
      %p100 = scmp.ne.s32.totalorder %s92, %s95
      %p101 = scmp.eq.s32.totalorder %s18, 0
      %p102 = por %p100, %p101
      %p103 = scmp.ne.s32.totalorder %s92, %s95
      %p104 = scmp.eq.s32.totalorder %s23, 1
      %p105 = por %p103, %p104
      %p106 = scmp.ne.s32.totalorder %s95, %s96
      %p107 = scmp.eq.s32.totalorder %s23, 0
      %p108 = por %p106, %p107
      %p109 = scmp.ne.s32.totalorder %s95, %s96
      %p110 = scmp.eq.s32.totalorder %s24, 1
      %p111 = por %p109, %p110
      %p113 = scmp.ne.s32.totalorder %s96, %s112
      %p114 = scmp.eq.s32.totalorder %s24, 0
      %p115 = por %p113, %p114
      %s116 = ssub.s32 %s26, %s33
      %p117 = scmp.eq.s32.totalorder %s116, 0
      %s119 = sadd.s32 %s118, 1
      %s120 = scalar_select %p117, %s118, %s119
      %p123 = pneg %p117
      %p124 = scmp.eq.s32.totalorder %s18, 1
      %p125 = por %p123, %p124
      %p126 = scmp.ne.s32.totalorder %s118, %s121
      %p127 = scmp.eq.s32.totalorder %s18, 0
      %p128 = por %p126, %p127
      %p129 = scmp.ne.s32.totalorder %s118, %s121
      %p130 = scmp.eq.s32.totalorder %s23, 1
      %p131 = por %p129, %p130
      %p132 = scmp.ne.s32.totalorder %s121, %s122
      %p133 = scmp.eq.s32.totalorder %s23, 0
      %p134 = por %p132, %p133
      %p135 = scmp.ne.s32.totalorder %s121, %s122
      %p136 = scmp.eq.s32.totalorder %s24, 1
      %p137 = por %p135, %p136
      %p139 = scmp.ne.s32.totalorder %s122, %s138
      %p140 = scmp.eq.s32.totalorder %s24, 0
      %p141 = por %p139, %p140
      %s143 = sadd.s32 %s142, 1
      %p146 = scmp.eq.s32.totalorder %s18, 1
      %p147 = scmp.ne.s32.totalorder %s142, %s144
      %p148 = scmp.eq.s32.totalorder %s18, 0
      %p149 = por %p147, %p148
      %p150 = scmp.ne.s32.totalorder %s142, %s144
      %p151 = scmp.eq.s32.totalorder %s23, 1
      %p152 = por %p150, %p151
      %p153 = scmp.ne.s32.totalorder %s144, %s145
      %p154 = scmp.eq.s32.totalorder %s23, 0
      %p155 = por %p153, %p154
      %p156 = scmp.ne.s32.totalorder %s144, %s145
      %p157 = scmp.eq.s32.totalorder %s24, 1
      %p158 = por %p156, %p157
      %p160 = scmp.ne.s32.totalorder %s145, %s159
      %p161 = scmp.eq.s32.totalorder %s24, 0
      %p162 = por %p160, %p161
      %s163 = ssub.s32 %s25, %s37
      %p164 = scmp.eq.s32.totalorder %s163, 0
      %s166 = sadd.s32 %s165, 1
      %s167 = scalar_select %p164, %s165, %s166
      %p170 = pneg %p164
      %p171 = scmp.eq.s32.totalorder %s18, 1
      %p172 = por %p170, %p171
      %p173 = scmp.ne.s32.totalorder %s165, %s168
      %p174 = scmp.eq.s32.totalorder %s18, 0
      %p175 = por %p173, %p174
      %p176 = scmp.ne.s32.totalorder %s165, %s168
      %p177 = scmp.eq.s32.totalorder %s23, 1
      %p178 = por %p176, %p177
      %p179 = scmp.ne.s32.totalorder %s168, %s169
      %p180 = scmp.eq.s32.totalorder %s23, 0
      %p181 = por %p179, %p180
      %p182 = scmp.ne.s32.totalorder %s168, %s169
      %p183 = scmp.eq.s32.totalorder %s24, 1
      %p184 = por %p182, %p183
      %p186 = scmp.ne.s32.totalorder %s169, %s185
      %p187 = scmp.eq.s32.totalorder %s24, 0
      %p188 = por %p186, %p187
      %p189 = scmp.le.s32.totalorder 1, %s18
      %p190 = scmp.lt.s32.totalorder %s18, 3
      %p191 = pnand %p189, %p190
      %p192 = pneg %p191
      // Predicated region
      $region9: #{tpu_custom_call.1} parent=5 // pred_check
        _
      $region10: #{tpu_custom_call.1} parent=5 // pred_check_branch
        %194 = sbr.rel (%p191) target = $region12
      $region11: #{tpu_custom_call.1} parent=5 // pred_region
        %s195 = ssub.s32 %s18, 1
        // Predicated region
        $region13: #{tpu_custom_call.1} parent=11 // pred_check
          %p196 = pneg %p82
        $region14: #{tpu_custom_call.1} parent=11 // pred_check_branch
          %198 = sbr.rel (%p196) target = $region16
        $region15: #{tpu_custom_call.1} parent=11 // pred_region
          %200 = vsyncadd [#allocation6], 0
          %s201 = smul.addr %s28, 4
          %s202 = scalar_lea.hbm %s1, %s201
          %s203 = sshll.u32 %s202, 4
          %s204 = int_to_ptr.hbm [resolvable:$true] %s203
          %s205 = sshll.u32 [#allocation5], 4
          %s206 = int_to_ptr.vmem [resolvable:$true] %s205
          %211 = dma.hbm_to_vmem [thread:$0]  %s204, 1024, %s206, [#allocation6], 64, 64, 4
        $region16: #{tpu_custom_call.1} parent=11 // pred_fallthru
          _
        // Predicated region
        $region17: #{tpu_custom_call.1} parent=11 // pred_check
          %p212 = pneg %p108
        $region18: #{tpu_custom_call.1} parent=11 // pred_check_branch
          %214 = sbr.rel (%p212) target = $region20
        $region19: #{tpu_custom_call.1} parent=11 // pred_region
          %p215 = scmp.lt.s32.totalorder %s28, 0
          %s216 = scalar_select %p215, %s28, 0
          %s217 = scalar_lea.vmem %s2, %s216
        $region20: #{tpu_custom_call.1} parent=11 // pred_fallthru
          _
        // Predicated region
        $region21: #{tpu_custom_call.1} parent=11 // pred_check
          %p218 = pneg %p134
        $region22: #{tpu_custom_call.1} parent=11 // pred_check_branch
          %220 = sbr.rel (%p218) target = $region24
        $region23: #{tpu_custom_call.1} parent=11 // pred_region
          %s221 = smul.u32 16, %s28
          %223 = vsyncadd [#allocation6], 0
          %s224 = smul.addr %s221, 4
          %s225 = scalar_lea.hbm %s3, %s224
          %s226 = sshll.u32 %s225, 4
          %s227 = int_to_ptr.hbm [resolvable:$true] %s226
          %s228 = sshll.u32 [#allocation7], 4
          %s229 = int_to_ptr.vmem [resolvable:$true] %s228
          %234 = dma.hbm_to_vmem [thread:$0]  %s227, 1024, %s229, [#allocation6], 64, 64, 4
        $region24: #{tpu_custom_call.1} parent=11 // pred_fallthru
          _
        // Predicated region
        $region25: #{tpu_custom_call.1} parent=11 // pred_check
          %p235 = pneg %p155
        $region26: #{tpu_custom_call.1} parent=11 // pred_check_branch
          %237 = sbr.rel (%p235) target = $region28
        $region27: #{tpu_custom_call.1} parent=11 // pred_region
          _
        $region28: #{tpu_custom_call.1} parent=11 // pred_fallthru
          _
      $region12: #{tpu_custom_call.1} parent=5 // pred_fallthru
        _
      %p238 = scmp.lt.s32.totalorder %s18, 2
      // Predicated region
      $region29: #{tpu_custom_call.1} parent=5 // pred_check
        %p239 = pneg %p238
      $region30: #{tpu_custom_call.1} parent=5 // pred_check_branch
        %241 = sbr.rel (%p239) target = $region32
      $region31: #{tpu_custom_call.1} parent=5 // pred_region
        // Predicated region
        $region33: #{tpu_custom_call.1} parent=31 // pred_check
          %p242 = pneg %p50
        $region34: #{tpu_custom_call.1} parent=31 // pred_check_branch
          %244 = sbr.rel (%p242) target = $region36
        $region35: #{tpu_custom_call.1} parent=31 // pred_region
          %s245 = sand.u32 %s40, 1
          %s246 = scalar_lea.sflag [#allocation3], %s245
          %s247 = sand.u32 %s40, 1
          %s248 = smul.addr %s247, 4
          %s249 = scalar_lea.vmem [#allocation2], %s248
          %251 = vsyncadd %s246, 0
          %s252 = smul.addr %s25, 4
          %s253 = scalar_lea.hbm %s0, %s252
          %s255 = sshll.u32 %s253, 4
          %s256 = int_to_ptr.hbm [resolvable:$true] %s255
          %s257 = sshll.u32 %s249, 4
          %s258 = int_to_ptr.vmem [resolvable:$true] %s257
          %260 = dma.hbm_to_vmem [thread:$0]  %s256, 64, %s258, %s246
        $region36: #{tpu_custom_call.1} parent=31 // pred_fallthru
          _
      $region32: #{tpu_custom_call.1} parent=5 // pred_fallthru
        _
      %p261 = scmp.le.s32.totalorder 1, %s18
      %p262 = scmp.lt.s32.totalorder %s18, 3
      %p263 = pnand %p261, %p262
      %p264 = pneg %p263
      // Predicated region
      $region37: #{tpu_custom_call.1} parent=5 // pred_check
        _
      $region38: #{tpu_custom_call.1} parent=5 // pred_check_branch
        %266 = sbr.rel (%p263) target = $region40
      $region39: #{tpu_custom_call.1} parent=5 // pred_region
        %s267 = ssub.s32 %s18, 1
        %s268 = sand.u32 %s43, 1
        %s269 = scalar_lea.sflag [#allocation3], %s268
        %s270 = sand.u32 %s43, 1
        %s271 = smul.addr %s270, 4
        %s272 = scalar_lea.vmem [#allocation2], %s271
        // Predicated region
        $region41: #{tpu_custom_call.1} parent=39 // pred_check
          %p273 = pneg %p56
        $region42: #{tpu_custom_call.1} parent=39 // pred_check_branch
          %275 = sbr.rel (%p273) target = $region44
        $region43: #{tpu_custom_call.1} parent=39 // pred_region
          %277 = dma.done %s269, 64
        $region44: #{tpu_custom_call.1} parent=39 // pred_fallthru
          _
        // Predicated region
        $region45: #{tpu_custom_call.1} parent=39 // pred_check
          %p278 = pneg %p82
        $region46: #{tpu_custom_call.1} parent=39 // pred_check_branch
          %280 = sbr.rel (%p278) target = $region48
        $region47: #{tpu_custom_call.1} parent=39 // pred_region
          %282 = dma.done [#allocation6], 1024
        $region48: #{tpu_custom_call.1} parent=39 // pred_fallthru
          _
        // Predicated region
        $region49: #{tpu_custom_call.1} parent=39 // pred_check
          %p283 = pneg %p134
        $region50: #{tpu_custom_call.1} parent=39 // pred_check_branch
          %285 = sbr.rel (%p283) target = $region52
        $region51: #{tpu_custom_call.1} parent=39 // pred_region
          %287 = dma.done [#allocation6], 1024
        $region52: #{tpu_custom_call.1} parent=39 // pred_fallthru
          _
        %s288 = sand.u32 %s43, 1
        %s289 = scalar_lea.sflag [#allocation3], %s288
        %s290 = sand.u32 %s43, 1
        %s291 = smul.addr %s290, 4
        %s292 = scalar_lea.vmem [#allocation2], %s291
        %p293 = pneg %p56
        %p294 = pneg %p53
        %p295 = pneg %p82
        %p296 = pneg %p79
        %p297 = scmp.lt.s32.totalorder %s28, 0
        %s298 = scalar_select %p297, %s28, 0
        %s299 = scalar_lea.vmem %s2, %s298
        %p300 = pneg %p108
        %p301 = pneg %p105
        %p302 = pneg %p134
        %p303 = pneg %p131
        %p304 = pneg %p155
        %p305 = pneg %p152
        %p306 = pneg %p181
        %p307 = pneg %p178
        %s308 = sand.u32 %s168, 1
        %s309 = scalar_lea.sflag [#allocation4], %s308
        %s310 = sand.u32 %s168, 1
        %s311 = smul.addr %s310, 8
        %s312 = scalar_lea.vmem [#allocation8], %s311
        %p313 = scmp.lt.s32.totalorder %s28, 0
        %s314 = scalar_select %p313, %s28, 0
        %s315 = scalar_lea.vmem %s2, %s314
        %s316 = smul.u32 16, %s28
        %v317 = vld [vmem:[%s272] sm:$0xf]
        %v318 = vld [vmem:[#allocation5] sm:$0xf]
        %v319 = vld [vmem:[#allocation5 + $0x4] sm:$0xf]
        %v320 = vld [vmem:[#allocation5 + $0x8] sm:$0xf]
        %v321 = vld [vmem:[#allocation5 + $0xc] sm:$0xf]
        %v322 = vld [vmem:[#allocation5 + $0x10] sm:$0xf]
        %v323 = vld [vmem:[#allocation5 + $0x14] sm:$0xf]
        %v324 = vld [vmem:[#allocation5 + $0x18] sm:$0xf]
        %v325 = vld [vmem:[#allocation5 + $0x1c] sm:$0xf]
        %v326 = vld [vmem:[#allocation5 + $0x20] sm:$0xf]
        %v327 = vld [vmem:[#allocation5 + $0x24] sm:$0xf]
        %v328 = vld [vmem:[#allocation5 + $0x28] sm:$0xf]
        %v329 = vld [vmem:[#allocation5 + $0x2c] sm:$0xf]
        %v330 = vld [vmem:[#allocation5 + $0x30] sm:$0xf]
        %v331 = vld [vmem:[#allocation5 + $0x34] sm:$0xf]
        %v332 = vld [vmem:[#allocation5 + $0x38] sm:$0xf]
        %v333 = vld [vmem:[#allocation5 + $0x3c] sm:$0xf]
        %v334 = vld [vmem:[%s315] sm:$0x1]
        %v336 = vperm.slane %v334, 0
        %v354 = vunpack.c.l.b16 %v318
        %v355 = vunpack.c.l.b16 %v319
        %v356 = vunpack.c.l.b16 %v320
        %v357 = vunpack.c.l.b16 %v321
        %v358 = vunpack.c.l.b16 %v322
        %v359 = vunpack.c.l.b16 %v323
        %v360 = vunpack.c.l.b16 %v324
        %v361 = vunpack.c.l.b16 %v325
        %v362 = vunpack.c.l.b16 %v326
        %v363 = vunpack.c.l.b16 %v327
        %v364 = vunpack.c.l.b16 %v328
        %v365 = vunpack.c.l.b16 %v329
        %v366 = vunpack.c.l.b16 %v330
        %v367 = vunpack.c.l.b16 %v331
        %v368 = vunpack.c.l.b16 %v332
        %v369 = vunpack.c.l.b16 %v333
        %v370 = vpack.c.b16 %v355, %v354
        %v371 = vpack.c.b16 %v357, %v356
        %v372 = vpack.c.b16 %v359, %v358
        %v373 = vpack.c.b16 %v361, %v360
        %v374 = vpack.c.b16 %v363, %v362
        %v375 = vpack.c.b16 %v365, %v364
        %v376 = vpack.c.b16 %v367, %v366
        %v377 = vpack.c.b16 %v369, %v368
        %386 = vmatpush.bf16.msra.mxu0 %v377
        %387 = vmatpush.bf16.msra.mxu0 %v376
        %388 = vmatpush.bf16.msra.mxu0 %v375
        %389 = vmatpush.bf16.msra.mxu0 %v374
        %390 = vmatpush.bf16.msra.mxu0 %v373
        %391 = vmatpush.bf16.msra.mxu0 %v372
        %392 = vmatpush.bf16.msra.mxu0 %v371
        %393 = vmatpush.bf16.msra.mxu0 %v370
        %394 = vmatmul.bf16.gmra.mxu0 %v317
        %v395 = vpop.f32.mrf.mxu0
        %v396 = vadd.f32 %v336, %v395
        %v397 = vpop.f32.mrf.mxu0
        %398 = vdwg.mxu0
        %v399 = vmax.f32 %v396, 0.0
        %v400 = vpack.c.bf16 %v399, %v399
        %v401 = vld [vmem:[#allocation7] sm:$0xf]
        %v402 = vld [vmem:[#allocation7 + $0x4] sm:$0xf]
        %v403 = vld [vmem:[#allocation7 + $0x8] sm:$0xf]
        %v404 = vld [vmem:[#allocation7 + $0xc] sm:$0xf]
        %v405 = vld [vmem:[#allocation7 + $0x10] sm:$0xf]
        %v406 = vld [vmem:[#allocation7 + $0x14] sm:$0xf]
        %v407 = vld [vmem:[#allocation7 + $0x18] sm:$0xf]
        %v408 = vld [vmem:[#allocation7 + $0x1c] sm:$0xf]
        %v409 = vld [vmem:[#allocation7 + $0x20] sm:$0xf]
        %v410 = vld [vmem:[#allocation7 + $0x24] sm:$0xf]
        %v411 = vld [vmem:[#allocation7 + $0x28] sm:$0xf]
        %v412 = vld [vmem:[#allocation7 + $0x2c] sm:$0xf]
        %v413 = vld [vmem:[#allocation7 + $0x30] sm:$0xf]
        %v414 = vld [vmem:[#allocation7 + $0x34] sm:$0xf]
        %v415 = vld [vmem:[#allocation7 + $0x38] sm:$0xf]
        %v416 = vld [vmem:[#allocation7 + $0x3c] sm:$0xf]
        %v433 = vunpack.c.l.b16 %v401
        %v434 = vunpack.c.l.b16 %v402
        %v435 = vunpack.c.l.b16 %v403
        %v436 = vunpack.c.l.b16 %v404
        %v437 = vunpack.c.l.b16 %v405
        %v438 = vunpack.c.l.b16 %v406
        %v439 = vunpack.c.l.b16 %v407
        %v440 = vunpack.c.l.b16 %v408
        %v441 = vunpack.c.l.b16 %v409
        %v442 = vunpack.c.l.b16 %v410
        %v443 = vunpack.c.l.b16 %v411
        %v444 = vunpack.c.l.b16 %v412
        %v445 = vunpack.c.l.b16 %v413
        %v446 = vunpack.c.l.b16 %v414
        %v447 = vunpack.c.l.b16 %v415
        %v448 = vunpack.c.l.b16 %v416
        %v449 = vpack.c.b16 %v434, %v433
        %v450 = vpack.c.b16 %v436, %v435
        %v451 = vpack.c.b16 %v438, %v437
        %v452 = vpack.c.b16 %v440, %v439
        %v453 = vpack.c.b16 %v442, %v441
        %v454 = vpack.c.b16 %v444, %v443
        %v455 = vpack.c.b16 %v446, %v445
        %v456 = vpack.c.b16 %v448, %v447
        %465 = vmatpush.bf16.msra.mxu0 %v456
        %466 = vmatpush.bf16.msra.mxu0 %v455
        %467 = vmatpush.bf16.msra.mxu0 %v454
        %468 = vmatpush.bf16.msra.mxu0 %v453
        %469 = vmatpush.bf16.msra.mxu0 %v452
        %470 = vmatpush.bf16.msra.mxu0 %v451
        %471 = vmatpush.bf16.msra.mxu0 %v450
        %472 = vmatpush.bf16.msra.mxu0 %v449
        %473 = vmatmul.bf16.gmra.mxu0 %v400
        %v474 = vpop.f32.mrf.mxu0
        %v475 = vadd.f32 0.0, %v474
        %v476 = vpop.f32.mrf.mxu0
        %477 = vdwg.mxu0
        %p478 = scmp.eq.s32.totalorder %s28, 0
        // Predicated region
        $region53: #{tpu_custom_call.1} parent=39 // pred_check
          %p479 = pneg %p478
        $region54: #{tpu_custom_call.1} parent=39 // pred_check_branch
          %481 = sbr.rel (%p479) target = $region56
        $region55: #{tpu_custom_call.1} parent=39 // pred_region
          %v482 = vld [vmem:[%s4] sm:$0x1]
          %v484 = vperm.slane %v482, 0
          %v486 = vadd.f32 %v475, %v484
          %487 = vst [vmem:[%s312] sm:$0xff] %v486
        $region56: #{tpu_custom_call.1} parent=39 // pred_fallthru
          _
        %p488 = scmp.gt.s32.totalorder %s28, 0
        // Predicated region
        $region57: #{tpu_custom_call.1} parent=39 // pred_check
          %p489 = pneg %p488
        $region58: #{tpu_custom_call.1} parent=39 // pred_check_branch
          %491 = sbr.rel (%p489) target = $region60
        $region59: #{tpu_custom_call.1} parent=39 // pred_region
          %v492 = vld [vmem:[%s312] sm:$0xff]
          %v493 = vadd.f32 %v492, %v475
          %494 = vst [vmem:[%s312] sm:$0xff] %v493
        $region60: #{tpu_custom_call.1} parent=39 // pred_fallthru
          _
        %s495 = sand.u32 %s168, 1
        %s496 = scalar_lea.sflag [#allocation4], %s495
        %s497 = sand.u32 %s168, 1
        %s498 = smul.addr %s497, 8
        %s499 = scalar_lea.vmem [#allocation8], %s498
        // Predicated region
        $region61: #{tpu_custom_call.1} parent=39 // pred_check
          %p500 = pneg %p178
        $region62: #{tpu_custom_call.1} parent=39 // pred_check_branch
          %502 = sbr.rel (%p500) target = $region64
        $region63: #{tpu_custom_call.1} parent=39 // pred_region
          %504 = vsyncadd %s496, 0
          %s505 = smul.addr %s27, 8
          %s506 = scalar_lea.hbm %s5, %s505
          %s508 = sshll.u32 %s499, 4
          %s509 = int_to_ptr.vmem [resolvable:$true] %s508
          %s510 = sshll.u32 %s506, 4
          %s511 = int_to_ptr.hbm [resolvable:$true] %s510
          %513 = dma.vmem_to_hbm [thread:$0]  %s509, 128, %s511, %s496
        $region64: #{tpu_custom_call.1} parent=39 // pred_fallthru
          _
      $region40: #{tpu_custom_call.1} parent=5 // pred_fallthru
        _
      %p514 = scmp.le.s32.totalorder 2, %s18
      // Predicated region
      $region65: #{tpu_custom_call.1} parent=5 // pred_check
        %p515 = pneg %p514
      $region66: #{tpu_custom_call.1} parent=5 // pred_check_branch
        %517 = sbr.rel (%p515) target = $region68
      $region67: #{tpu_custom_call.1} parent=5 // pred_region
        %s518 = ssub.s32 %s18, 2
        // Predicated region
        $region69: #{tpu_custom_call.1} parent=67 // pred_check
          %p519 = pneg %p184
        $region70: #{tpu_custom_call.1} parent=67 // pred_check_branch
          %521 = sbr.rel (%p519) target = $region72
        $region71: #{tpu_custom_call.1} parent=67 // pred_region
          %s522 = sand.u32 %s169, 1
          %s523 = scalar_lea.sflag [#allocation4], %s522
          %s524 = sand.u32 %s169, 1
          %s525 = smul.addr %s524, 8
          %s526 = scalar_lea.vmem [#allocation8], %s525
          %528 = dma.done %s523, 128
        $region72: #{tpu_custom_call.1} parent=67 // pred_fallthru
          _
      $region68: #{tpu_custom_call.1} parent=5 // pred_fallthru
        _
    $region6: #{tpu_custom_call.1} parent=1 // loop_footer
      %s22 = sadd.s32 1, %s18
    $region7: #{tpu_custom_call.1} parent=1 // loop_footer_branch
      %17 = sbr.rel target = $region3
    $region8: #{tpu_custom_call.1} parent=1 // loop_exit
      _
    %529 = vsyncpa [#allocation3], 1
    %s530 = scalar_lea.sflag [#allocation3], 1
    %531 = vsyncpa %s530, 1
    %532 = vsyncpa [#allocation6], 1
    %533 = vsyncpa [#allocation4], 1
    %s534 = scalar_lea.sflag [#allocation4], 1
    %535 = vsyncpa %s534, 1

</llo_original>
